<compile_context>
chip_gen: v7x
topology: tpu7x:2x2x1
jax: 0.10.0
libtpu: 0.0.40
codegen_flags: <defaults>
</compile_context>

<pallas_src>
import functools

import jax
import jax.numpy as jnp
from jax import lax
from jax.experimental import pallas as pl
from jax.experimental.pallas import tpu as pltpu

NEG_SLOPE = 0.01  # nn.LeakyReLU default


def _leaky(h):
    # max(h, slope*h) == leaky_relu(h) for 0 < slope < 1; cheaper than cmp+select.
    return jnp.maximum(h, NEG_SLOPE * h)


def _round_up(a, m):
    return ((a + m - 1) // m) * m


def _make_kernel(sub, n_sub):
    """Build the fused kernel for a given static sub-chunk size / count."""

    def kernel(x_ref, w1_ref, b1_ref, w2_ref, b2_ref, w3_ref, b3_ref, o_ref):
        # x_ref: (c_in, TL) column tile (length on the lane axis).
        # w*:    (c_next, c_prev) in native Conv1d orientation.
        # b*:    (c_next, 1) f32; accumulation is f32 via preferred_element_type.
        def compute(start):
            x = x_ref[:, pl.ds(start, sub)].astype(w1_ref.dtype)
            h = jnp.dot(w1_ref[...], x,
                        preferred_element_type=jnp.float32) + b1_ref[...]
            h = _leaky(h)
            # Dropout -> identity (eval mode)
            h = jnp.dot(w2_ref[...], h.astype(w2_ref.dtype),
                        preferred_element_type=jnp.float32) + b2_ref[...]
            h = _leaky(h)
            # Dropout -> identity (eval mode)
            y = jnp.dot(w3_ref[...], h.astype(w3_ref.dtype),
                        preferred_element_type=jnp.float32) + b3_ref[...]
            o_ref[:, pl.ds(start, sub)] = y.astype(o_ref.dtype)

        if n_sub == 1:
            compute(0)
        else:
            def body(i, carry):
                compute(pl.multiple_of(i * sub, sub))
                return carry
            lax.fori_loop(0, n_sub, body, 0, unroll=True)

    return kernel


def preconv_forward(x_ncl, params, *, tl=4096, compute_dtype=None, out_dtype=None):
    """x_ncl: (B, c_in, L), matching torch NCL. Returns (B, c_out, L).

    tl:            max lane tile along the length axis (rounded to 128; adaptive).
    compute_dtype: optional matmul-operand dtype (e.g. jnp.bfloat16 on v6e/v7x).
                   x stays in its HBM dtype; the tile is cast inside the kernel.
                   Accumulation is always f32.
    out_dtype:     optional output dtype (e.g. jnp.bfloat16 to halve the write
                   stream); defaults to the input dtype.
    """
    w1, b1, w2, b2, w3, b3 = params
    B, c_in, L = x_ncl.shape
    c_mid = w1.shape[0]
    c_out = w3.shape[0]
    out_dtype = x_ncl.dtype if out_dtype is None else out_dtype

    # ---- adaptive lane tile -------------------------------------------------
    tl_max = _round_up(max(int(tl), 128), 128)
    if L <= 128:
        tl_eff = L                       # single full-extent lane block
    else:
        tl_eff = min(_round_up(L, 128), tl_max)
        n_128 = -(-L // 128)
        if B == 1 and n_128 >= 2:
            # Keep >= 2 lane tiles so both v7x TensorCores get work.
            tl_eff = min(tl_eff, 128 * (-(-n_128 // 2)))
    n_l = pl.cdiv(L, tl_eff)             # ragged tail handled by Pallas masking

    # Inner sub-chunk so f32 intermediates (c_mid x sub) stay vreg-friendly.
    if tl_eff <= 512:
        sub, n_sub = tl_eff, 1
    else:
        if tl_eff % 512 == 0:
            sub = 512
        elif tl_eff % 256 == 0:
            sub = 256
        else:
            sub = 128
        n_sub = tl_eff // sub

    # ---- parameters ---------------------------------------------------------
    # Only the (tiny, VMEM-resident) weights are cast in the wrapper; x is cast
    # per-tile inside the kernel to avoid an extra HBM pass.
    if compute_dtype is not None:
        w1 = w1.astype(compute_dtype)
        w2 = w2.astype(compute_dtype)
        w3 = w3.astype(compute_dtype)

    # Biases broadcast along lanes; keep f32 (added to the f32 accumulator).
    b1r = b1.reshape(c_mid, 1).astype(jnp.float32)
    b2r = b2.reshape(c_mid, 1).astype(jnp.float32)
    b3r = b3.reshape(c_out, 1).astype(jnp.float32)

    # Weights/biases: constant index_map => DMA'd once, resident in VMEM.
    wspec = lambda shape: pl.BlockSpec(shape, lambda b, l: (0, 0))

    kernel = _make_kernel(sub, n_sub)

    out = pl.pallas_call(
        kernel,
        out_shape=jax.ShapeDtypeStruct((B, c_out, L), out_dtype),
        grid_spec=pltpu.PrefetchScalarGridSpec(
            num_scalar_prefetch=0,
            grid=(B, n_l),
            in_specs=[
                pl.BlockSpec((None, c_in, tl_eff), lambda b, l: (b, 0, l)),
                wspec((c_mid, c_in)),
                wspec((c_mid, 1)),
                wspec((c_mid, c_mid)),
                wspec((c_mid, 1)),
                wspec((c_out, c_mid)),
                wspec((c_out, 1)),
            ],
            out_specs=pl.BlockSpec((None, c_out, tl_eff), lambda b, l: (b, 0, l)),
        ),
        compiler_params=pltpu.CompilerParams(
            dimension_semantics=("parallel", "parallel")),
    )(x_ncl, w1, b1r, w2, b2r, w3, b3r)

    return out


def make_params(key, c_in, c_mid, c_out):
    """Deterministic synthetic parameters with Conv1d weight shapes (kernel_size=1)."""
    ks = jax.random.split(key, 6)
    scale = lambda fan_in: 1.0 / jnp.sqrt(fan_in)
    w1 = jax.random.uniform(ks[0], (c_mid, c_in), jnp.float32, -scale(c_in), scale(c_in))
    b1 = jax.random.uniform(ks[1], (c_mid,), jnp.float32, -scale(c_in), scale(c_in))
    w2 = jax.random.uniform(ks[2], (c_mid, c_mid), jnp.float32, -scale(c_mid), scale(c_mid))
    b2 = jax.random.uniform(ks[3], (c_mid,), jnp.float32, -scale(c_mid), scale(c_mid))
    w3 = jax.random.uniform(ks[4], (c_out, c_mid), jnp.float32, -scale(c_mid), scale(c_mid))
    b3 = jax.random.uniform(ks[5], (c_out,), jnp.float32, -scale(c_mid), scale(c_mid))
    return (w1, b1, w2, b2, w3, b3)


def preconv_reference(x_ncl, params):
    """Plain-JAX reference replicating the torch module in eval mode."""
    w1, b1, w2, b2, w3, b3 = params
    h = jnp.einsum('oc,bcl->bol', w1, x_ncl) + b1[None, :, None]
    h = jnp.where(h > 0, h, NEG_SLOPE * h)
    h = jnp.einsum('oc,bcl->bol', w2, h) + b2[None, :, None]
    h = jnp.where(h > 0, h, NEG_SLOPE * h)
    y = jnp.einsum('oc,bcl->bol', w3, h) + b3[None, :, None]
    return y


if __name__ == "__main__":
    B, c_in, c_mid, c_out, L = 2, 32, 64, 48, 16

    key = jax.random.PRNGKey(0)
    kx, kp, kx2, kx3 = jax.random.split(key, 4)
    x = jax.random.normal(kx, (B, c_in, L), jnp.float32)
    params = make_params(kp, c_in, c_mid, c_out)

    # 1) f32 path, short L (single full-extent lane block).
    y = jax.block_until_ready(preconv_forward(x, params))
    y_ref = preconv_reference(x, params)
    assert y.shape == (B, c_out, L)
    assert jnp.allclose(y, y_ref, atol=1e-4, rtol=1e-4), "f32 mismatch vs reference"

    # 2) Ragged tail: L=200 -> one 256-lane block per batch row, masked tail.
    x2 = jax.random.normal(kx2, (3, c_in, 200), jnp.float32)
    y2 = jax.block_until_ready(preconv_forward(x2, params))
    y2_ref = preconv_reference(x2, params)
    assert y2.shape == (3, c_out, 200)
    assert jnp.allclose(y2, y2_ref, atol=1e-4, rtol=1e-4), "ragged-tail mismatch vs reference"

    # 3) B=1, longer L: tile split into >=2 grid steps (v7x dual-TC) and the
    #    inner unrolled sub-chunk loop is exercised.
    x3 = jax.random.normal(kx3, (1, c_in, 1280), jnp.float32)
    y3 = jax.block_until_ready(preconv_forward(x3, params))
    y3_ref = preconv_reference(x3, params)
    assert y3.shape == (1, c_out, 1280)
    assert jnp.allclose(y3, y3_ref, atol=1e-4, rtol=1e-4), "long-L mismatch vs reference"

    # 4) bf16 matmul operands + bf16 output (v6e/v7x path); f32 accumulation.
    y_bf16 = jax.block_until_ready(
        preconv_forward(x, params, compute_dtype=jnp.bfloat16, out_dtype=jnp.bfloat16))
    assert y_bf16.dtype == jnp.bfloat16
    assert jnp.allclose(y_bf16.astype(jnp.float32), y_ref, atol=1e-1, rtol=1e-1), \
        "bf16 mismatch vs reference"

    print("KERNEL_OK")
</pallas_src>

<mosaic_0001>
module attributes {stable_mosaic.version = 11 : i64} {
  func.func @kernel(%arg0: i32, %arg1: i32, %arg2: memref<1x32x16xf32, #tpu.memory_space<vmem>>, %arg3: memref<64x32xf32, #tpu.memory_space<vmem>>, %arg4: memref<64x1xf32, #tpu.memory_space<vmem>>, %arg5: memref<64x64xf32, #tpu.memory_space<vmem>>, %arg6: memref<64x1xf32, #tpu.memory_space<vmem>>, %arg7: memref<48x64xf32, #tpu.memory_space<vmem>>, %arg8: memref<48x1xf32, #tpu.memory_space<vmem>>, %arg9: memref<1x48x16xf32, #tpu.memory_space<vmem>>) attributes {dimension_semantics = [#tpu.dimension_semantics<parallel>, #tpu.dimension_semantics<parallel>], iteration_bounds = array<i64: 2, 1>, scalar_prefetch = 0 : i64, scratch_operands = 0 : i64, tpu.core_type = #tpu.core_type<tc>, window_params = [{transform_indices = @transform_0, window_bounds = array<i64: 1, 32, 16>}, {pipeline_mode = #tpu.pipeline_mode<synchronous>, transform_indices = @transform_1, window_bounds = array<i64: 64, 32>}, {pipeline_mode = #tpu.pipeline_mode<synchronous>, transform_indices = @transform_2, window_bounds = array<i64: 64, 1>}, {pipeline_mode = #tpu.pipeline_mode<synchronous>, transform_indices = @transform_3, window_bounds = array<i64: 64, 64>}, {pipeline_mode = #tpu.pipeline_mode<synchronous>, transform_indices = @transform_4, window_bounds = array<i64: 64, 1>}, {pipeline_mode = #tpu.pipeline_mode<synchronous>, transform_indices = @transform_5, window_bounds = array<i64: 48, 64>}, {pipeline_mode = #tpu.pipeline_mode<synchronous>, transform_indices = @transform_6, window_bounds = array<i64: 48, 1>}, {transform_indices = @transform_7, window_bounds = array<i64: 1, 48, 16>}]} {
    %c0 = arith.constant 0 : index
    %c0_0 = arith.constant 0 : index
    %c0_1 = arith.constant 0 : index
    %0 = vector.load %arg2[%c0, %c0_0, %c0_1] : memref<1x32x16xf32, #tpu.memory_space<vmem>>, vector<1x32x16xf32>
    %1 = vector.shape_cast %0 : vector<1x32x16xf32> to vector<32x16xf32>
    %c0_2 = arith.constant 0 : index
    %c0_3 = arith.constant 0 : index
    %2 = vector.load %arg3[%c0_2, %c0_3] : memref<64x32xf32, #tpu.memory_space<vmem>>, vector<64x32xf32>
    %cst = arith.constant dense<0.000000e+00> : vector<64x16xf32>
    %3 = tpu.matmul %2, %1, %cst {dimension_numbers = #tpu.dot_dimension_numbers<[1], [0], [0], [1], [0, 0, 1, 1], [], []>} : vector<64x32xf32>, vector<32x16xf32>, vector<64x16xf32> -> vector<64x16xf32>
    %c0_4 = arith.constant 0 : index
    %c0_5 = arith.constant 0 : index
    %4 = vector.load %arg4[%c0_4, %c0_5] : memref<64x1xf32, #tpu.memory_space<vmem>>, vector<64x1xf32>
    %5 = vector.broadcast %4 : vector<64x1xf32> to vector<64x16xf32>
    %6 = arith.addf %3, %5 : vector<64x16xf32>
    %cst_6 = arith.constant 0.00999999977 : f32
    %7 = vector.broadcast %cst_6 : f32 to vector<64x16xf32>
    %8 = arith.mulf %7, %6 : vector<64x16xf32>
    %9 = arith.maximumf %6, %8 : vector<64x16xf32>
    %c0_7 = arith.constant 0 : index
    %c0_8 = arith.constant 0 : index
    %10 = vector.load %arg5[%c0_7, %c0_8] : memref<64x64xf32, #tpu.memory_space<vmem>>, vector<64x64xf32>
    %cst_9 = arith.constant dense<0.000000e+00> : vector<64x16xf32>
    %11 = tpu.matmul %10, %9, %cst_9 {dimension_numbers = #tpu.dot_dimension_numbers<[1], [0], [0], [1], [0, 0, 1, 1], [], []>} : vector<64x64xf32>, vector<64x16xf32>, vector<64x16xf32> -> vector<64x16xf32>
    %c0_10 = arith.constant 0 : index
    %c0_11 = arith.constant 0 : index
    %12 = vector.load %arg6[%c0_10, %c0_11] : memref<64x1xf32, #tpu.memory_space<vmem>>, vector<64x1xf32>
    %13 = vector.broadcast %12 : vector<64x1xf32> to vector<64x16xf32>
    %14 = arith.addf %11, %13 : vector<64x16xf32>
    %cst_12 = arith.constant 0.00999999977 : f32
    %15 = vector.broadcast %cst_12 : f32 to vector<64x16xf32>
    %16 = arith.mulf %15, %14 : vector<64x16xf32>
    %17 = arith.maximumf %14, %16 : vector<64x16xf32>
    %c0_13 = arith.constant 0 : index
    %c0_14 = arith.constant 0 : index
    %18 = vector.load %arg7[%c0_13, %c0_14] : memref<48x64xf32, #tpu.memory_space<vmem>>, vector<48x64xf32>
    %cst_15 = arith.constant dense<0.000000e+00> : vector<48x16xf32>
    %19 = tpu.matmul %18, %17, %cst_15 {dimension_numbers = #tpu.dot_dimension_numbers<[1], [0], [0], [1], [0, 0, 1, 1], [], []>} : vector<48x64xf32>, vector<64x16xf32>, vector<48x16xf32> -> vector<48x16xf32>
    %c0_16 = arith.constant 0 : index
    %c0_17 = arith.constant 0 : index
    %20 = vector.load %arg8[%c0_16, %c0_17] : memref<48x1xf32, #tpu.memory_space<vmem>>, vector<48x1xf32>
    %21 = vector.broadcast %20 : vector<48x1xf32> to vector<48x16xf32>
    %22 = arith.addf %19, %21 : vector<48x16xf32>
    %c0_18 = arith.constant 0 : index
    %c0_19 = arith.constant 0 : index
    %c0_20 = arith.constant 0 : index
    %23 = vector.load %arg9[%c0_18, %c0_19, %c0_20] : memref<1x48x16xf32, #tpu.memory_space<vmem>>, vector<1x48x16xf32>
    %24 = vector.shape_cast %23 : vector<1x48x16xf32> to vector<48x16xf32>
    %25 = vector.shape_cast %22 : vector<48x16xf32> to vector<1x48x16xf32>
    tpu.vector_store %arg9[%c0_18, %c0_19, %c0_20], %25 {strides = array<i32>} : memref<1x48x16xf32, #tpu.memory_space<vmem>>, vector<1x48x16xf32>,
    return
  }
  func.func @transform_0(%arg0: i32, %arg1: i32) -> (i32, i32, i32) {
    %c0_i32 = arith.constant 0 : i32
    %c0_i32_0 = arith.constant 0 : i32
    return %arg0, %c0_i32, %arg1 : i32, i32, i32
  }
  func.func @transform_1(%arg0: i32, %arg1: i32) -> (i32, i32) {
    %c0_i32 = arith.constant 0 : i32
    %c0_i32_0 = arith.constant 0 : i32
    %c0_i32_1 = arith.constant 0 : i32
    return %c0_i32, %c0_i32_0 : i32, i32
  }
  func.func @transform_2(%arg0: i32, %arg1: i32) -> (i32, i32) {
    %c0_i32 = arith.constant 0 : i32
    %c0_i32_0 = arith.constant 0 : i32
    %c0_i32_1 = arith.constant 0 : i32
    return %c0_i32, %c0_i32_0 : i32, i32
  }
  func.func @transform_3(%arg0: i32, %arg1: i32) -> (i32, i32) {
    %c0_i32 = arith.constant 0 : i32
    %c0_i32_0 = arith.constant 0 : i32
    %c0_i32_1 = arith.constant 0 : i32
    return %c0_i32, %c0_i32_0 : i32, i32
  }
  func.func @transform_4(%arg0: i32, %arg1: i32) -> (i32, i32) {
    %c0_i32 = arith.constant 0 : i32
    %c0_i32_0 = arith.constant 0 : i32
    %c0_i32_1 = arith.constant 0 : i32
    return %c0_i32, %c0_i32_0 : i32, i32
  }
  func.func @transform_5(%arg0: i32, %arg1: i32) -> (i32, i32) {
    %c0_i32 = arith.constant 0 : i32
    %c0_i32_0 = arith.constant 0 : i32
    %c0_i32_1 = arith.constant 0 : i32
    return %c0_i32, %c0_i32_0 : i32, i32
  }
  func.func @transform_6(%arg0: i32, %arg1: i32) -> (i32, i32) {
    %c0_i32 = arith.constant 0 : i32
    %c0_i32_0 = arith.constant 0 : i32
    %c0_i32_1 = arith.constant 0 : i32
    return %c0_i32, %c0_i32_0 : i32, i32
  }
  func.func @transform_7(%arg0: i32, %arg1: i32) -> (i32, i32, i32) {
    %c0_i32 = arith.constant 0 : i32
    %c0_i32_0 = arith.constant 0 : i32
    return %arg0, %c0_i32, %arg1 : i32, i32, i32
  }
}

</mosaic_0001>

<llo_original>
// kernel: tpu_custom_call.1
$region0: #{tpu_custom_call.1}
  #allocation0 [shape = 'u32[]', space=smem, size = 0x4, offset = 0x4, fixed_abs, tag = 'smem constant byte address 0x4 - core index']
  #allocation1 [shape = 'u32[144,128]{1,0:T(1,128)}', space=vmem, size = 0x12000, scoped, tag = 'internal scratch']
  %s0 = inlined_call_operand.vmem [shape: f32[2,32,16], index: 0, kind: input, shape index: {}]
  %s1 = inlined_call_operand.vmem [shape: f32[64,32], index: 1, kind: input, shape index: {}]
  %s2 = inlined_call_operand.vmem [shape: f32[64,1], index: 2, kind: input, shape index: {}]
  %s3 = inlined_call_operand.vmem [shape: f32[64,64], index: 3, kind: input, shape index: {}]
  %s4 = inlined_call_operand.vmem [shape: f32[64,1], index: 4, kind: input, shape index: {}]
  %s5 = inlined_call_operand.vmem [shape: f32[48,64], index: 5, kind: input, shape index: {}]
  %s6 = inlined_call_operand.vmem [shape: f32[48,1], index: 6, kind: input, shape index: {}]
  %s7 = inlined_call_operand.vmem [shape: f32[2,48,16], index: 7, kind: output, shape index: {}]
  %s8 = sld [smem:[#allocation0]]
  $region61: #{tpu_custom_call.1} parent=0
    _
  %s10 = ssub.s32 1, %s8
  %s11 = scalar_select 0, %s10, %s8
  loop: start=0, step=1, limit=4
  $region2: #{tpu_custom_call.1} parent=0 // loop_pre_header
    _
  $region3: #{tpu_custom_call.1} parent=0 // loop_header
    %s13 = sphi 0, %s17
    %p14 = scmp.ge.s32.totalorder %s13, 4
    %s20 = sphi 0, %s32
    %s21 = sphi 0, %s28
    %s22 = sphi 0, %s20
    %s23 = sphi 0, %s21
    %s24 = sphi 0, %s22
    %s25 = sphi 0, %s23
    %s37 = sphi 0, %s39
    %s40 = sphi 0, %s37
    %s41 = sphi 0, %s40
    %s57 = sphi 0, %s41
    %s61 = sphi 0, %s61
    %s63 = sphi 0, %s61
    %s64 = sphi 0, %s63
    %s78 = sphi 0, %s64
    %s82 = sphi 0, %s82
    %s84 = sphi 0, %s82
    %s85 = sphi 0, %s84
    %s99 = sphi 0, %s85
    %s103 = sphi 0, %s103
    %s105 = sphi 0, %s103
    %s106 = sphi 0, %s105
    %s120 = sphi 0, %s106
    %s124 = sphi 0, %s124
    %s126 = sphi 0, %s124
    %s127 = sphi 0, %s126
    %s141 = sphi 0, %s127
    %s145 = sphi 0, %s145
    %s147 = sphi 0, %s145
    %s148 = sphi 0, %s147
    %s162 = sphi 0, %s148
    %s166 = sphi 0, %s166
    %s168 = sphi 0, %s166
    %s169 = sphi 0, %s168
    %s183 = sphi 0, %s169
    %s191 = sphi 0, %s193
    %s194 = sphi 0, %s191
    %s195 = sphi 0, %s194
    %s211 = sphi 0, %s195
  $region4: #{tpu_custom_call.1} parent=0 // loop_header_branch
    %16 = sbr.rel (%p14) target = $region8
  $region5: #{tpu_custom_call.1} parent=0 // loop_body
    %s18 = ssub.s32 %s13, 1
    %s19 = ssub.s32 %s13, 2
    %s26 = sadd.s32 1, %s21
    %p27 = scmp.ge.s32.totalorder %s26, 1
    %s28 = scalar_select %p27, 0, %s26
    %s29 = sadd.s32 1, %s20
    %s30 = scalar_select %p27, %s29, %s20
    %p31 = scmp.ge.s32.totalorder %s30, 2
    %s32 = scalar_select %p31, 0, %s30
    %s33 = ssub.s32 %s20, %s32
    %s34 = ssub.s32 %s21, %s28
    %s35 = sor.u32 %s33, %s34
    %p36 = scmp.eq.s32.totalorder %s35, 0
    %s38 = sadd.s32 %s37, 1
    %s39 = scalar_select %p36, %s37, %s38
    %p42 = pneg %p36
    %p43 = scmp.eq.s32.totalorder %s13, 1
    %p44 = por %p42, %p43
    %p45 = scmp.ne.s32.totalorder %s37, %s40
    %p46 = scmp.eq.s32.totalorder %s13, 0
    %p47 = por %p45, %p46
    %p48 = scmp.ne.s32.totalorder %s37, %s40
    %p49 = scmp.eq.s32.totalorder %s18, 1
    %p50 = por %p48, %p49
    %p51 = scmp.ne.s32.totalorder %s40, %s41
    %p52 = scmp.eq.s32.totalorder %s18, 0
    %p53 = por %p51, %p52
    %p54 = scmp.ne.s32.totalorder %s40, %s41
    %p55 = scmp.eq.s32.totalorder %s19, 1
    %p56 = por %p54, %p55
    %p58 = scmp.ne.s32.totalorder %s41, %s57
    %p59 = scmp.eq.s32.totalorder %s19, 0
    %p60 = por %p58, %p59
    %s62 = sadd.s32 %s61, 1
    %p65 = scmp.eq.s32.totalorder %s13, 1
    %p66 = scmp.ne.s32.totalorder %s61, %s63
    %p67 = scmp.eq.s32.totalorder %s13, 0
    %p68 = por %p66, %p67
    %p69 = scmp.ne.s32.totalorder %s61, %s63
    %p70 = scmp.eq.s32.totalorder %s18, 1
    %p71 = por %p69, %p70
    %p72 = scmp.ne.s32.totalorder %s63, %s64
    %p73 = scmp.eq.s32.totalorder %s18, 0
    %p74 = por %p72, %p73
    %p75 = scmp.ne.s32.totalorder %s63, %s64
    %p76 = scmp.eq.s32.totalorder %s19, 1
    %p77 = por %p75, %p76
    %p79 = scmp.ne.s32.totalorder %s64, %s78
    %p80 = scmp.eq.s32.totalorder %s19, 0
    %p81 = por %p79, %p80
    %s83 = sadd.s32 %s82, 1
    %p86 = scmp.eq.s32.totalorder %s13, 1
    %p87 = scmp.ne.s32.totalorder %s82, %s84
    %p88 = scmp.eq.s32.totalorder %s13, 0
    %p89 = por %p87, %p88
    %p90 = scmp.ne.s32.totalorder %s82, %s84
    %p91 = scmp.eq.s32.totalorder %s18, 1
    %p92 = por %p90, %p91
    %p93 = scmp.ne.s32.totalorder %s84, %s85
    %p94 = scmp.eq.s32.totalorder %s18, 0
    %p95 = por %p93, %p94
    %p96 = scmp.ne.s32.totalorder %s84, %s85
    %p97 = scmp.eq.s32.totalorder %s19, 1
    %p98 = por %p96, %p97
    %p100 = scmp.ne.s32.totalorder %s85, %s99
    %p101 = scmp.eq.s32.totalorder %s19, 0
    %p102 = por %p100, %p101
    %s104 = sadd.s32 %s103, 1
    %p107 = scmp.eq.s32.totalorder %s13, 1
    %p108 = scmp.ne.s32.totalorder %s103, %s105
    %p109 = scmp.eq.s32.totalorder %s13, 0
    %p110 = por %p108, %p109
    %p111 = scmp.ne.s32.totalorder %s103, %s105
    %p112 = scmp.eq.s32.totalorder %s18, 1
    %p113 = por %p111, %p112
    %p114 = scmp.ne.s32.totalorder %s105, %s106
    %p115 = scmp.eq.s32.totalorder %s18, 0
    %p116 = por %p114, %p115
    %p117 = scmp.ne.s32.totalorder %s105, %s106
    %p118 = scmp.eq.s32.totalorder %s19, 1
    %p119 = por %p117, %p118
    %p121 = scmp.ne.s32.totalorder %s106, %s120
    %p122 = scmp.eq.s32.totalorder %s19, 0
    %p123 = por %p121, %p122
    %s125 = sadd.s32 %s124, 1
    %p128 = scmp.eq.s32.totalorder %s13, 1
    %p129 = scmp.ne.s32.totalorder %s124, %s126
    %p130 = scmp.eq.s32.totalorder %s13, 0
    %p131 = por %p129, %p130
    %p132 = scmp.ne.s32.totalorder %s124, %s126
    %p133 = scmp.eq.s32.totalorder %s18, 1
    %p134 = por %p132, %p133
    %p135 = scmp.ne.s32.totalorder %s126, %s127
    %p136 = scmp.eq.s32.totalorder %s18, 0
    %p137 = por %p135, %p136
    %p138 = scmp.ne.s32.totalorder %s126, %s127
    %p139 = scmp.eq.s32.totalorder %s19, 1
    %p140 = por %p138, %p139
    %p142 = scmp.ne.s32.totalorder %s127, %s141
    %p143 = scmp.eq.s32.totalorder %s19, 0
    %p144 = por %p142, %p143
    %s146 = sadd.s32 %s145, 1
    %p149 = scmp.eq.s32.totalorder %s13, 1
    %p150 = scmp.ne.s32.totalorder %s145, %s147
    %p151 = scmp.eq.s32.totalorder %s13, 0
    %p152 = por %p150, %p151
    %p153 = scmp.ne.s32.totalorder %s145, %s147
    %p154 = scmp.eq.s32.totalorder %s18, 1
    %p155 = por %p153, %p154
    %p156 = scmp.ne.s32.totalorder %s147, %s148
    %p157 = scmp.eq.s32.totalorder %s18, 0
    %p158 = por %p156, %p157
    %p159 = scmp.ne.s32.totalorder %s147, %s148
    %p160 = scmp.eq.s32.totalorder %s19, 1
    %p161 = por %p159, %p160
    %p163 = scmp.ne.s32.totalorder %s148, %s162
    %p164 = scmp.eq.s32.totalorder %s19, 0
    %p165 = por %p163, %p164
    %s167 = sadd.s32 %s166, 1
    %p170 = scmp.eq.s32.totalorder %s13, 1
    %p171 = scmp.ne.s32.totalorder %s166, %s168
    %p172 = scmp.eq.s32.totalorder %s13, 0
    %p173 = por %p171, %p172
    %p174 = scmp.ne.s32.totalorder %s166, %s168
    %p175 = scmp.eq.s32.totalorder %s18, 1
    %p176 = por %p174, %p175
    %p177 = scmp.ne.s32.totalorder %s168, %s169
    %p178 = scmp.eq.s32.totalorder %s18, 0
    %p179 = por %p177, %p178
    %p180 = scmp.ne.s32.totalorder %s168, %s169
    %p181 = scmp.eq.s32.totalorder %s19, 1
    %p182 = por %p180, %p181
    %p184 = scmp.ne.s32.totalorder %s169, %s183
    %p185 = scmp.eq.s32.totalorder %s19, 0
    %p186 = por %p184, %p185
    %s187 = ssub.s32 %s20, %s32
    %s188 = ssub.s32 %s21, %s28
    %s189 = sor.u32 %s187, %s188
    %p190 = scmp.eq.s32.totalorder %s189, 0
    %s192 = sadd.s32 %s191, 1
    %s193 = scalar_select %p190, %s191, %s192
    %p196 = pneg %p190
    %p197 = scmp.eq.s32.totalorder %s13, 1
    %p198 = por %p196, %p197
    %p199 = scmp.ne.s32.totalorder %s191, %s194
    %p200 = scmp.eq.s32.totalorder %s13, 0
    %p201 = por %p199, %p200
    %p202 = scmp.ne.s32.totalorder %s191, %s194
    %p203 = scmp.eq.s32.totalorder %s18, 1
    %p204 = por %p202, %p203
    %p205 = scmp.ne.s32.totalorder %s194, %s195
    %p206 = scmp.eq.s32.totalorder %s18, 0
    %p207 = por %p205, %p206
    %p208 = scmp.ne.s32.totalorder %s194, %s195
    %p209 = scmp.eq.s32.totalorder %s19, 1
    %p210 = por %p208, %p209
    %p212 = scmp.ne.s32.totalorder %s195, %s211
    %p213 = scmp.eq.s32.totalorder %s19, 0
    %p214 = por %p212, %p213
    %p215 = scmp.le.s32.totalorder 1, %s13
    %p216 = scmp.lt.s32.totalorder %s13, 3
    %p217 = pnand %p215, %p216
    %p218 = pneg %p217
    // Predicated region
    $region9: #{tpu_custom_call.1} parent=5 // pred_check
      _
    $region10: #{tpu_custom_call.1} parent=5 // pred_check_branch
      %220 = sbr.rel (%p217) target = $region12
    $region11: #{tpu_custom_call.1} parent=5 // pred_region
      %s221 = ssub.s32 %s13, 1
      // Predicated region
      $region13: #{tpu_custom_call.1} parent=11 // pred_check
        %p222 = pneg %p74
      $region14: #{tpu_custom_call.1} parent=11 // pred_check_branch
        %224 = sbr.rel (%p222) target = $region16
      $region15: #{tpu_custom_call.1} parent=11 // pred_region
        _
      $region16: #{tpu_custom_call.1} parent=11 // pred_fallthru
        _
      // Predicated region
      $region17: #{tpu_custom_call.1} parent=11 // pred_check
        %p225 = pneg %p95
      $region18: #{tpu_custom_call.1} parent=11 // pred_check_branch
        %227 = sbr.rel (%p225) target = $region20
      $region19: #{tpu_custom_call.1} parent=11 // pred_region
        _
      $region20: #{tpu_custom_call.1} parent=11 // pred_fallthru
        _
      // Predicated region
      $region21: #{tpu_custom_call.1} parent=11 // pred_check
        %p228 = pneg %p116
      $region22: #{tpu_custom_call.1} parent=11 // pred_check_branch
        %230 = sbr.rel (%p228) target = $region24
      $region23: #{tpu_custom_call.1} parent=11 // pred_region
        _
      $region24: #{tpu_custom_call.1} parent=11 // pred_fallthru
        _
      // Predicated region
      $region25: #{tpu_custom_call.1} parent=11 // pred_check
        %p231 = pneg %p137
      $region26: #{tpu_custom_call.1} parent=11 // pred_check_branch
        %233 = sbr.rel (%p231) target = $region28
      $region27: #{tpu_custom_call.1} parent=11 // pred_region
        _
      $region28: #{tpu_custom_call.1} parent=11 // pred_fallthru
        _
      // Predicated region
      $region29: #{tpu_custom_call.1} parent=11 // pred_check
        %p234 = pneg %p158
      $region30: #{tpu_custom_call.1} parent=11 // pred_check_branch
        %236 = sbr.rel (%p234) target = $region32
      $region31: #{tpu_custom_call.1} parent=11 // pred_region
        _
      $region32: #{tpu_custom_call.1} parent=11 // pred_fallthru
        _
      // Predicated region
      $region33: #{tpu_custom_call.1} parent=11 // pred_check
        %p237 = pneg %p179
      $region34: #{tpu_custom_call.1} parent=11 // pred_check_branch
        %239 = sbr.rel (%p237) target = $region36
      $region35: #{tpu_custom_call.1} parent=11 // pred_region
        _
      $region36: #{tpu_custom_call.1} parent=11 // pred_fallthru
        _
    $region12: #{tpu_custom_call.1} parent=5 // pred_fallthru
      _
    %p240 = scmp.lt.s32.totalorder %s13, 2
    // Predicated region
    $region37: #{tpu_custom_call.1} parent=5 // pred_check
      %p241 = pneg %p240
    $region38: #{tpu_custom_call.1} parent=5 // pred_check_branch
      %243 = sbr.rel (%p241) target = $region40
    $region39: #{tpu_custom_call.1} parent=5 // pred_region
      // Predicated region
      $region41: #{tpu_custom_call.1} parent=39 // pred_check
        %p244 = pneg %p47
      $region42: #{tpu_custom_call.1} parent=39 // pred_check_branch
        %246 = sbr.rel (%p244) target = $region44
      $region43: #{tpu_custom_call.1} parent=39 // pred_region
        %p247 = scmp.lt.s32.totalorder %s20, 1
        %s248 = scalar_select %p247, %s20, 1
        %p249 = scmp.lt.s32.totalorder %s21, 0
        %s250 = scalar_select %p249, %s21, 0
        %s251 = smul.addr %s248, 4
        %s252 = sadd.s32 %s250, %s251
        %s253 = smul.addr %s252, 8
        %s254 = scalar_lea.vmem %s0, %s253
      $region44: #{tpu_custom_call.1} parent=39 // pred_fallthru
        _
    $region40: #{tpu_custom_call.1} parent=5 // pred_fallthru
      _
    %p255 = scmp.le.s32.totalorder 1, %s13
    %p256 = scmp.lt.s32.totalorder %s13, 3
    %p257 = pnand %p255, %p256
    %p258 = pneg %p257
    // Predicated region
    $region45: #{tpu_custom_call.1} parent=5 // pred_check
      _
    $region46: #{tpu_custom_call.1} parent=5 // pred_check_branch
      %260 = sbr.rel (%p257) target = $region48
    $region47: #{tpu_custom_call.1} parent=5 // pred_region
      %s261 = ssub.s32 %s13, 1
      %p262 = scmp.lt.s32.totalorder %s22, 1
      %s263 = scalar_select %p262, %s22, 1
      %p264 = scmp.lt.s32.totalorder %s23, 0
      %s265 = scalar_select %p264, %s23, 0
      %s266 = smul.addr %s263, 4
      %s267 = sadd.s32 %s265, %s266
      %s268 = smul.addr %s267, 8
      %s269 = scalar_lea.vmem %s0, %s268
      %p270 = pneg %p53
      %p271 = pneg %p50
      %p272 = pneg %p74
      %p273 = pneg %p71
      %p274 = pneg %p95
      %p275 = pneg %p92
      %p276 = pneg %p116
      %p277 = pneg %p113
      %p278 = pneg %p137
      %p279 = pneg %p134
      %p280 = pneg %p158
      %p281 = pneg %p155
      %p282 = pneg %p179
      %p283 = pneg %p176
      %p284 = pneg %p207
      %p285 = pneg %p204
      %p286 = scmp.lt.s32.totalorder %s22, 1
      %s287 = scalar_select %p286, %s22, 1
      %p288 = scmp.lt.s32.totalorder %s23, 0
      %s289 = scalar_select %p288, %s23, 0
      %s290 = smul.addr %s287, 6
      %s291 = sadd.s32 %s289, %s290
      %s292 = smul.addr %s291, 8
      %s293 = scalar_lea.vmem %s7, %s292
      %p294 = scmp.lt.s32.totalorder %s22, 1
      %s295 = scalar_select %p294, %s22, 1
      %p296 = scmp.lt.s32.totalorder %s23, 0
      %s297 = scalar_select %p296, %s23, 0
      %s298 = smul.addr %s295, 4
      %s299 = sadd.s32 %s297, %s298
      %s300 = smul.addr %s299, 8
      %s301 = scalar_lea.vmem %s0, %s300
      %p302 = scmp.lt.s32.totalorder %s22, 1
      %s303 = scalar_select %p302, %s22, 1
      %p304 = scmp.lt.s32.totalorder %s23, 0
      %s305 = scalar_select %p304, %s23, 0
      %s306 = smul.addr %s303, 6
      %s307 = sadd.s32 %s305, %s306
      %s308 = smul.addr %s307, 8
      %s309 = scalar_lea.vmem %s7, %s308
      %v310 = vld [vmem:[%s301] sm:$0xff]
      %v311 = vld [vmem:[%s301 + $0x8] sm:$0xff]
      %v312 = vld [vmem:[%s301 + $0x10] sm:$0xff]
      %v313 = vld [vmem:[%s301 + $0x18] sm:$0xff]
      %v314 = vld [vmem:[%s1] sm:$0xff]
      %v315 = vld [vmem:[%s1 + $0x8] sm:$0xff]
      %v316 = vld [vmem:[%s1 + $0x10] sm:$0xff]
      %v317 = vld [vmem:[%s1 + $0x18] sm:$0xff]
      %v318 = vld [vmem:[%s1 + $0x20] sm:$0xff]
      %v319 = vld [vmem:[%s1 + $0x28] sm:$0xff]
      %v320 = vld [vmem:[%s1 + $0x30] sm:$0xff]
      %v321 = vld [vmem:[%s1 + $0x38] sm:$0xff]
      %v322 = vld [vmem:[%s2] sm:$0xff]
      %v323 = vld [vmem:[%s2 + $0x8] sm:$0xff]
      %v324 = vld [vmem:[%s2 + $0x10] sm:$0xff]
      %v325 = vld [vmem:[%s2 + $0x18] sm:$0xff]
      %v326 = vld [vmem:[%s2 + $0x20] sm:$0xff]
      %v327 = vld [vmem:[%s2 + $0x28] sm:$0xff]
      %v328 = vld [vmem:[%s2 + $0x30] sm:$0xff]
      %v329 = vld [vmem:[%s2 + $0x38] sm:$0xff]
      %331 = vset.pattern.permute.xlu0 0
      %332 = vperm.xlu0 %331, %v322
      %v333 = vpop.permute.xlu0 %332
      %336 = vset.pattern.permute.xlu0 0
      %337 = vperm.xlu0 %336, %v323
      %v338 = vpop.permute.xlu0 %337
      %341 = vset.pattern.permute.xlu0 0
      %342 = vperm.xlu0 %341, %v324
      %v343 = vpop.permute.xlu0 %342
      %346 = vset.pattern.permute.xlu0 0
      %347 = vperm.xlu0 %346, %v325
      %v348 = vpop.permute.xlu0 %347
      %351 = vset.pattern.permute.xlu0 0
      %352 = vperm.xlu0 %351, %v326
      %v353 = vpop.permute.xlu0 %352
      %356 = vset.pattern.permute.xlu0 0
      %357 = vperm.xlu0 %356, %v327
      %v358 = vpop.permute.xlu0 %357
      %361 = vset.pattern.permute.xlu0 0
      %362 = vperm.xlu0 %361, %v328
      %v363 = vpop.permute.xlu0 %362
      %366 = vset.pattern.permute.xlu0 0
      %367 = vperm.xlu0 %366, %v329
      %v368 = vpop.permute.xlu0 %367
      %vm370 = vcmask 261120
      %v372 = vsel %vm370, %v314, 0
      %v375 = vsel %vm370, %v315, 0
      %v378 = vsel %vm370, %v316, 0
      %v381 = vsel %vm370, %v317, 0
      %v384 = vsel %vm370, %v318, 0
      %v387 = vsel %vm370, %v319, 0
      %v390 = vsel %vm370, %v320, 0
      %v393 = vsel %vm370, %v321, 0
      %395 = vmatprep.subr.mxu0 0.0
      %396 = vmatpush1.msra.mxu0 %v310
      %397 = vmatprep.subr.mxu0 0.0
      %398 = vmatpush1.msra.mxu0 %v311
      %399 = vmatprep.subr.mxu0 0.0
      %400 = vmatpush1.msra.mxu0 %v312
      %401 = vmatprep.subr.mxu0 0.0
      %402 = vmatpush1.msra.mxu0 %v313
      %403 = vmatprep.subr.mxu0 0.0
      %404 = vmatpush1.msra.mxu0 0.0
      %405 = vmatprep.subr.mxu0 0.0
      %406 = vmatpush1.msra.mxu0 0.0
      %407 = vmatprep.subr.mxu0 0.0
      %408 = vmatpush1.msra.mxu0 0.0
      %409 = vmatprep.subr.mxu0 0.0
      %410 = vmatpush1.msra.mxu0 0.0
      %411 = vmatprep.subr.mxu0 0.0
      %412 = vmatpush1.msra.mxu0 0.0
      %413 = vmatprep.subr.mxu0 0.0
      %414 = vmatpush1.msra.mxu0 0.0
      %415 = vmatprep.subr.mxu0 0.0
      %416 = vmatpush1.msra.mxu0 0.0
      %417 = vmatprep.subr.mxu0 0.0
      %418 = vmatpush1.msra.mxu0 0.0
      %419 = vmatprep.subr.mxu0 0.0
      %420 = vmatpush1.msra.mxu0 0.0
      %421 = vmatprep.subr.mxu0 0.0
      %422 = vmatpush1.msra.mxu0 0.0
      %423 = vmatprep.subr.mxu0 0.0
      %424 = vmatpush1.msra.mxu0 0.0
      %425 = vmatprep.subr.mxu0 0.0
      %426 = vmatpush1.msra.mxu0 0.0
      %427 = vmatprep.subr.mxu0 0.0
      %428 = vmatpush1.msra.mxu0 0.0
      %429 = vmatprep.subr.mxu0 0.0
      %430 = vmatpush1.msra.mxu0 0.0
      %431 = vmatprep.subr.mxu0 0.0
      %432 = vmatpush1.msra.mxu0 0.0
      %433 = vmatprep.subr.mxu0 0.0
      %434 = vmatpush1.msra.mxu0 0.0
      %435 = vmatprep.subr.mxu0 0.0
      %436 = vmatpush1.msra.mxu0 0.0
      %437 = vmatprep.subr.mxu0 0.0
      %438 = vmatpush1.msra.mxu0 0.0
      %439 = vmatprep.subr.mxu0 0.0
      %440 = vmatpush1.msra.mxu0 0.0
      %441 = vmatprep.subr.mxu0 0.0
      %442 = vmatpush1.msra.mxu0 0.0
      %443 = vmatprep.subr.mxu0 0.0
      %444 = vmatpush1.msra.mxu0 0.0
      %445 = vmatprep.subr.mxu0 0.0
      %446 = vmatpush1.msra.mxu0 0.0
      %447 = vmatprep.subr.mxu0 0.0
      %448 = vmatpush1.msra.mxu0 0.0
      %449 = vmatprep.subr.mxu0 0.0
      %450 = vmatpush1.msra.mxu0 0.0
      %451 = vmatprep.subr.mxu0 0.0
      %452 = vmatpush1.msra.mxu0 0.0
      %453 = vmatprep.subr.mxu0 0.0
      %454 = vmatpush1.msra.mxu0 0.0
      %455 = vmatprep.subr.mxu0 0.0
      %456 = vmatpush1.msra.mxu0 0.0
      %457 = vmatprep.subr.mxu0 0.0
      %458 = vmatpush1.msra.mxu0 0.0
      %459 = vmatprep.mubr.f32.mxu0 0.0
      %460 = vmatmul.mubr.f32.gmra.mrb[0].mxu0 %v372
      %v461 = vpop.f32.mrb[0].mxu0
      %v462 = vadd.f32 %v333, %v461
      %v463 = vpop.f32.mrb[0].mxu0
      %464 = vmatprep.mubr.f32.mxu0 0.0
      %465 = vmatmul.mubr.f32.gmra.mrb[0].mxu0 %v375
      %v466 = vpop.f32.mrb[0].mxu0
      %v467 = vadd.f32 %v338, %v466
      %v468 = vpop.f32.mrb[0].mxu0
      %469 = vmatprep.mubr.f32.mxu0 0.0
      %470 = vmatmul.mubr.f32.gmra.mrb[0].mxu0 %v378
      %v471 = vpop.f32.mrb[0].mxu0
      %v472 = vadd.f32 %v343, %v471
      %v473 = vpop.f32.mrb[0].mxu0
      %474 = vmatprep.mubr.f32.mxu0 0.0
      %475 = vmatmul.mubr.f32.gmra.mrb[0].mxu0 %v381
      %v476 = vpop.f32.mrb[0].mxu0
      %v477 = vadd.f32 %v348, %v476
      %v478 = vpop.f32.mrb[0].mxu0
      %479 = vmatprep.mubr.f32.mxu0 0.0
      %480 = vmatmul.mubr.f32.gmra.mrb[0].mxu0 %v384
      %v481 = vpop.f32.mrb[0].mxu0
      %v482 = vadd.f32 %v353, %v481
      %v483 = vpop.f32.mrb[0].mxu0
      %484 = vmatprep.mubr.f32.mxu0 0.0
      %485 = vmatmul.mubr.f32.gmra.mrb[0].mxu0 %v387
      %v486 = vpop.f32.mrb[0].mxu0
      %v487 = vadd.f32 %v358, %v486
      %v488 = vpop.f32.mrb[0].mxu0
      %489 = vmatprep.mubr.f32.mxu0 0.0
      %490 = vmatmul.mubr.f32.gmra.mrb[0].mxu0 %v390
      %v491 = vpop.f32.mrb[0].mxu0
      %v492 = vadd.f32 %v363, %v491
      %v493 = vpop.f32.mrb[0].mxu0
      %494 = vmatprep.mubr.f32.mxu0 0.0
      %495 = vmatmul.mubr.f32.gmra.mrb[0].mxu0 %v393
      %v496 = vpop.f32.mrb[0].mxu0
      %v497 = vadd.f32 %v368, %v496
      %v498 = vpop.f32.mrb[0].mxu0
      %499 = vdwg.mxu0
      %v500 = vmul.f32 %v462, 0.01
      %v501 = vmul.f32 %v467, 0.01
      %v502 = vmul.f32 %v472, 0.01
      %v503 = vmul.f32 %v477, 0.01
      %v504 = vmul.f32 %v482, 0.01
      %v505 = vmul.f32 %v487, 0.01
      %v506 = vmul.f32 %v492, 0.01
      %v507 = vmul.f32 %v497, 0.01
      %v508 = vmax.f32 %v462, %v500
      %v509 = vmax.f32 %v467, %v501
      %v510 = vmax.f32 %v472, %v502
      %v511 = vmax.f32 %v477, %v503
      %v512 = vmax.f32 %v482, %v504
      %v513 = vmax.f32 %v487, %v505
      %v514 = vmax.f32 %v492, %v506
      %v515 = vmax.f32 %v497, %v507
      %v516 = vld [vmem:[%s3] sm:$0xff]
      %v517 = vld [vmem:[%s3 + $0x8] sm:$0xff]
      %v518 = vld [vmem:[%s3 + $0x10] sm:$0xff]
      %v519 = vld [vmem:[%s3 + $0x18] sm:$0xff]
      %v520 = vld [vmem:[%s3 + $0x20] sm:$0xff]
      %v521 = vld [vmem:[%s3 + $0x28] sm:$0xff]
      %v522 = vld [vmem:[%s3 + $0x30] sm:$0xff]
      %v523 = vld [vmem:[%s3 + $0x38] sm:$0xff]
      %v524 = vld [vmem:[%s4] sm:$0xff]
      %v525 = vld [vmem:[%s4 + $0x8] sm:$0xff]
      %v526 = vld [vmem:[%s4 + $0x10] sm:$0xff]
      %v527 = vld [vmem:[%s4 + $0x18] sm:$0xff]
      %v528 = vld [vmem:[%s4 + $0x20] sm:$0xff]
      %v529 = vld [vmem:[%s4 + $0x28] sm:$0xff]
      %v530 = vld [vmem:[%s4 + $0x30] sm:$0xff]
      %v531 = vld [vmem:[%s4 + $0x38] sm:$0xff]
      %533 = vset.pattern.permute.xlu0 0
      %534 = vperm.xlu0 %533, %v524
      %v535 = vpop.permute.xlu0 %534
      %538 = vset.pattern.permute.xlu0 0
      %539 = vperm.xlu0 %538, %v525
      %v540 = vpop.permute.xlu0 %539
      %543 = vset.pattern.permute.xlu0 0
      %544 = vperm.xlu0 %543, %v526
      %v545 = vpop.permute.xlu0 %544
      %548 = vset.pattern.permute.xlu0 0
      %549 = vperm.xlu0 %548, %v527
      %v550 = vpop.permute.xlu0 %549
      %553 = vset.pattern.permute.xlu0 0
      %554 = vperm.xlu0 %553, %v528
      %v555 = vpop.permute.xlu0 %554
      %558 = vset.pattern.permute.xlu0 0
      %559 = vperm.xlu0 %558, %v529
      %v560 = vpop.permute.xlu0 %559
      %563 = vset.pattern.permute.xlu0 0
      %564 = vperm.xlu0 %563, %v530
      %v565 = vpop.permute.xlu0 %564
      %568 = vset.pattern.permute.xlu0 0
      %569 = vperm.xlu0 %568, %v531
      %v570 = vpop.permute.xlu0 %569
      %vm572 = vcmask 523264
      %v574 = vsel %vm572, %v516, 0
      %v577 = vsel %vm572, %v517, 0
      %v580 = vsel %vm572, %v518, 0
      %v583 = vsel %vm572, %v519, 0
      %v586 = vsel %vm572, %v520, 0
      %v589 = vsel %vm572, %v521, 0
      %v592 = vsel %vm572, %v522, 0
      %v595 = vsel %vm572, %v523, 0
      %597 = vmatprep.subr.mxu0 0.0
      %598 = vmatpush1.msra.mxu0 %v508
      %599 = vmatprep.subr.mxu0 0.0
      %600 = vmatpush1.msra.mxu0 %v509
      %601 = vmatprep.subr.mxu0 0.0
      %602 = vmatpush1.msra.mxu0 %v510
      %603 = vmatprep.subr.mxu0 0.0
      %604 = vmatpush1.msra.mxu0 %v511
      %605 = vmatprep.subr.mxu0 0.0
      %606 = vmatpush1.msra.mxu0 %v512
      %607 = vmatprep.subr.mxu0 0.0
      %608 = vmatpush1.msra.mxu0 %v513
      %609 = vmatprep.subr.mxu0 0.0
      %610 = vmatpush1.msra.mxu0 %v514
      %611 = vmatprep.subr.mxu0 0.0
      %612 = vmatpush1.msra.mxu0 %v515
      %613 = vmatprep.subr.mxu0 0.0
      %614 = vmatpush1.msra.mxu0 0.0
      %615 = vmatprep.subr.mxu0 0.0
      %616 = vmatpush1.msra.mxu0 0.0
      %617 = vmatprep.subr.mxu0 0.0
      %618 = vmatpush1.msra.mxu0 0.0
      %619 = vmatprep.subr.mxu0 0.0
      %620 = vmatpush1.msra.mxu0 0.0
      %621 = vmatprep.subr.mxu0 0.0
      %622 = vmatpush1.msra.mxu0 0.0
      %623 = vmatprep.subr.mxu0 0.0
      %624 = vmatpush1.msra.mxu0 0.0
      %625 = vmatprep.subr.mxu0 0.0
      %626 = vmatpush1.msra.mxu0 0.0
      %627 = vmatprep.subr.mxu0 0.0
      %628 = vmatpush1.msra.mxu0 0.0
      %629 = vmatprep.subr.mxu0 0.0
      %630 = vmatpush1.msra.mxu0 0.0
      %631 = vmatprep.subr.mxu0 0.0
      %632 = vmatpush1.msra.mxu0 0.0
      %633 = vmatprep.subr.mxu0 0.0
      %634 = vmatpush1.msra.mxu0 0.0
      %635 = vmatprep.subr.mxu0 0.0
      %636 = vmatpush1.msra.mxu0 0.0
      %637 = vmatprep.subr.mxu0 0.0
      %638 = vmatpush1.msra.mxu0 0.0
      %639 = vmatprep.subr.mxu0 0.0
      %640 = vmatpush1.msra.mxu0 0.0
      %641 = vmatprep.subr.mxu0 0.0
      %642 = vmatpush1.msra.mxu0 0.0
      %643 = vmatprep.subr.mxu0 0.0
      %644 = vmatpush1.msra.mxu0 0.0
      %645 = vmatprep.subr.mxu0 0.0
      %646 = vmatpush1.msra.mxu0 0.0
      %647 = vmatprep.subr.mxu0 0.0
      %648 = vmatpush1.msra.mxu0 0.0
      %649 = vmatprep.subr.mxu0 0.0
      %650 = vmatpush1.msra.mxu0 0.0
      %651 = vmatprep.subr.mxu0 0.0
      %652 = vmatpush1.msra.mxu0 0.0
      %653 = vmatprep.subr.mxu0 0.0
      %654 = vmatpush1.msra.mxu0 0.0
      %655 = vmatprep.subr.mxu0 0.0
      %656 = vmatpush1.msra.mxu0 0.0
      %657 = vmatprep.subr.mxu0 0.0
      %658 = vmatpush1.msra.mxu0 0.0
      %659 = vmatprep.subr.mxu0 0.0
      %660 = vmatpush1.msra.mxu0 0.0
      %661 = vmatprep.mubr.f32.mxu0 0.0
      %662 = vmatmul.mubr.f32.gmra.mrb[0].mxu0 %v574
      %v663 = vpop.f32.mrb[0].mxu0
      %v664 = vadd.f32 %v535, %v663
      %v665 = vpop.f32.mrb[0].mxu0
      %666 = vmatprep.mubr.f32.mxu0 0.0
      %667 = vmatmul.mubr.f32.gmra.mrb[0].mxu0 %v577
      %v668 = vpop.f32.mrb[0].mxu0
      %v669 = vadd.f32 %v540, %v668
      %v670 = vpop.f32.mrb[0].mxu0
      %671 = vmatprep.mubr.f32.mxu0 0.0
      %672 = vmatmul.mubr.f32.gmra.mrb[0].mxu0 %v580
      %v673 = vpop.f32.mrb[0].mxu0
      %v674 = vadd.f32 %v545, %v673
      %v675 = vpop.f32.mrb[0].mxu0
      %676 = vmatprep.mubr.f32.mxu0 0.0
      %677 = vmatmul.mubr.f32.gmra.mrb[0].mxu0 %v583
      %v678 = vpop.f32.mrb[0].mxu0
      %v679 = vadd.f32 %v550, %v678
      %v680 = vpop.f32.mrb[0].mxu0
      %681 = vmatprep.mubr.f32.mxu0 0.0
      %682 = vmatmul.mubr.f32.gmra.mrb[0].mxu0 %v586
      %v683 = vpop.f32.mrb[0].mxu0
      %v684 = vadd.f32 %v555, %v683
      %v685 = vpop.f32.mrb[0].mxu0
      %686 = vmatprep.mubr.f32.mxu0 0.0
      %687 = vmatmul.mubr.f32.gmra.mrb[0].mxu0 %v589
      %v688 = vpop.f32.mrb[0].mxu0
      %v689 = vadd.f32 %v560, %v688
      %v690 = vpop.f32.mrb[0].mxu0
      %691 = vmatprep.mubr.f32.mxu0 0.0
      %692 = vmatmul.mubr.f32.gmra.mrb[0].mxu0 %v592
      %v693 = vpop.f32.mrb[0].mxu0
      %v694 = vadd.f32 %v565, %v693
      %v695 = vpop.f32.mrb[0].mxu0
      %696 = vmatprep.mubr.f32.mxu0 0.0
      %697 = vmatmul.mubr.f32.gmra.mrb[0].mxu0 %v595
      %v698 = vpop.f32.mrb[0].mxu0
      %v699 = vadd.f32 %v570, %v698
      %v700 = vpop.f32.mrb[0].mxu0
      %701 = vdwg.mxu0
      %v702 = vmul.f32 %v664, 0.01
      %v703 = vmul.f32 %v669, 0.01
      %v704 = vmul.f32 %v674, 0.01
      %v705 = vmul.f32 %v679, 0.01
      %v706 = vmul.f32 %v684, 0.01
      %v707 = vmul.f32 %v689, 0.01
      %v708 = vmul.f32 %v694, 0.01
      %v709 = vmul.f32 %v699, 0.01
      %v710 = vmax.f32 %v664, %v702
      %v711 = vmax.f32 %v669, %v703
      %v712 = vmax.f32 %v674, %v704
      %v713 = vmax.f32 %v679, %v705
      %v714 = vmax.f32 %v684, %v706
      %v715 = vmax.f32 %v689, %v707
      %v716 = vmax.f32 %v694, %v708
      %v717 = vmax.f32 %v699, %v709
      %v718 = vld [vmem:[%s5] sm:$0xff]
      %v719 = vld [vmem:[%s5 + $0x8] sm:$0xff]
      %v720 = vld [vmem:[%s5 + $0x10] sm:$0xff]
      %v721 = vld [vmem:[%s5 + $0x18] sm:$0xff]
      %v722 = vld [vmem:[%s5 + $0x20] sm:$0xff]
      %v723 = vld [vmem:[%s5 + $0x28] sm:$0xff]
      %v724 = vld [vmem:[%s6] sm:$0xff]
      %v725 = vld [vmem:[%s6 + $0x8] sm:$0xff]
      %v726 = vld [vmem:[%s6 + $0x10] sm:$0xff]
      %v727 = vld [vmem:[%s6 + $0x18] sm:$0xff]
      %v728 = vld [vmem:[%s6 + $0x20] sm:$0xff]
      %v729 = vld [vmem:[%s6 + $0x28] sm:$0xff]
      %731 = vset.pattern.permute.xlu0 0
      %732 = vperm.xlu0 %731, %v724
      %v733 = vpop.permute.xlu0 %732
      %736 = vset.pattern.permute.xlu0 0
      %737 = vperm.xlu0 %736, %v725
      %v738 = vpop.permute.xlu0 %737
      %741 = vset.pattern.permute.xlu0 0
      %742 = vperm.xlu0 %741, %v726
      %v743 = vpop.permute.xlu0 %742
      %746 = vset.pattern.permute.xlu0 0
      %747 = vperm.xlu0 %746, %v727
      %v748 = vpop.permute.xlu0 %747
      %751 = vset.pattern.permute.xlu0 0
      %752 = vperm.xlu0 %751, %v728
      %v753 = vpop.permute.xlu0 %752
      %756 = vset.pattern.permute.xlu0 0
      %757 = vperm.xlu0 %756, %v729
      %v758 = vpop.permute.xlu0 %757
      %v761 = vsel %vm572, %v718, 0
      %v764 = vsel %vm572, %v719, 0
      %v767 = vsel %vm572, %v720, 0
      %v770 = vsel %vm572, %v721, 0
      %v773 = vsel %vm572, %v722, 0
      %v776 = vsel %vm572, %v723, 0
      %778 = vmatprep.subr.mxu0 0.0
      %779 = vmatpush1.msra.mxu0 %v710
      %780 = vmatprep.subr.mxu0 0.0
      %781 = vmatpush1.msra.mxu0 %v711
      %782 = vmatprep.subr.mxu0 0.0
      %783 = vmatpush1.msra.mxu0 %v712
      %784 = vmatprep.subr.mxu0 0.0
      %785 = vmatpush1.msra.mxu0 %v713
      %786 = vmatprep.subr.mxu0 0.0
      %787 = vmatpush1.msra.mxu0 %v714
      %788 = vmatprep.subr.mxu0 0.0
      %789 = vmatpush1.msra.mxu0 %v715
      %790 = vmatprep.subr.mxu0 0.0
      %791 = vmatpush1.msra.mxu0 %v716
      %792 = vmatprep.subr.mxu0 0.0
      %793 = vmatpush1.msra.mxu0 %v717
      %794 = vmatprep.subr.mxu0 0.0
      %795 = vmatpush1.msra.mxu0 0.0
      %796 = vmatprep.subr.mxu0 0.0
      %797 = vmatpush1.msra.mxu0 0.0
      %798 = vmatprep.subr.mxu0 0.0
      %799 = vmatpush1.msra.mxu0 0.0
      %800 = vmatprep.subr.mxu0 0.0
      %801 = vmatpush1.msra.mxu0 0.0
      %802 = vmatprep.subr.mxu0 0.0
      %803 = vmatpush1.msra.mxu0 0.0
      %804 = vmatprep.subr.mxu0 0.0
      %805 = vmatpush1.msra.mxu0 0.0
      %806 = vmatprep.subr.mxu0 0.0
      %807 = vmatpush1.msra.mxu0 0.0
      %808 = vmatprep.subr.mxu0 0.0
      %809 = vmatpush1.msra.mxu0 0.0
      %810 = vmatprep.subr.mxu0 0.0
      %811 = vmatpush1.msra.mxu0 0.0
      %812 = vmatprep.subr.mxu0 0.0
      %813 = vmatpush1.msra.mxu0 0.0
      %814 = vmatprep.subr.mxu0 0.0
      %815 = vmatpush1.msra.mxu0 0.0
      %816 = vmatprep.subr.mxu0 0.0
      %817 = vmatpush1.msra.mxu0 0.0
      %818 = vmatprep.subr.mxu0 0.0
      %819 = vmatpush1.msra.mxu0 0.0
      %820 = vmatprep.subr.mxu0 0.0
      %821 = vmatpush1.msra.mxu0 0.0
      %822 = vmatprep.subr.mxu0 0.0
      %823 = vmatpush1.msra.mxu0 0.0
      %824 = vmatprep.subr.mxu0 0.0
      %825 = vmatpush1.msra.mxu0 0.0
      %826 = vmatprep.subr.mxu0 0.0
      %827 = vmatpush1.msra.mxu0 0.0
      %828 = vmatprep.subr.mxu0 0.0
      %829 = vmatpush1.msra.mxu0 0.0
      %830 = vmatprep.subr.mxu0 0.0
      %831 = vmatpush1.msra.mxu0 0.0
      %832 = vmatprep.subr.mxu0 0.0
      %833 = vmatpush1.msra.mxu0 0.0
      %834 = vmatprep.subr.mxu0 0.0
      %835 = vmatpush1.msra.mxu0 0.0
      %836 = vmatprep.subr.mxu0 0.0
      %837 = vmatpush1.msra.mxu0 0.0
      %838 = vmatprep.subr.mxu0 0.0
      %839 = vmatpush1.msra.mxu0 0.0
      %840 = vmatprep.subr.mxu0 0.0
      %841 = vmatpush1.msra.mxu0 0.0
      %842 = vmatprep.mubr.f32.mxu0 0.0
      %843 = vmatmul.mubr.f32.gmra.mrb[0].mxu0 %v761
      %v844 = vpop.f32.mrb[0].mxu0
      %v845 = vadd.f32 %v733, %v844
      %v846 = vpop.f32.mrb[0].mxu0
      %847 = vmatprep.mubr.f32.mxu0 0.0
      %848 = vmatmul.mubr.f32.gmra.mrb[0].mxu0 %v764
      %v849 = vpop.f32.mrb[0].mxu0
      %v850 = vadd.f32 %v738, %v849
      %v851 = vpop.f32.mrb[0].mxu0
      %852 = vmatprep.mubr.f32.mxu0 0.0
      %853 = vmatmul.mubr.f32.gmra.mrb[0].mxu0 %v767
      %v854 = vpop.f32.mrb[0].mxu0
      %v855 = vadd.f32 %v743, %v854
      %v856 = vpop.f32.mrb[0].mxu0
      %857 = vmatprep.mubr.f32.mxu0 0.0
      %858 = vmatmul.mubr.f32.gmra.mrb[0].mxu0 %v770
      %v859 = vpop.f32.mrb[0].mxu0
      %v860 = vadd.f32 %v748, %v859
      %v861 = vpop.f32.mrb[0].mxu0
      %862 = vmatprep.mubr.f32.mxu0 0.0
      %863 = vmatmul.mubr.f32.gmra.mrb[0].mxu0 %v773
      %v864 = vpop.f32.mrb[0].mxu0
      %v865 = vadd.f32 %v753, %v864
      %v866 = vpop.f32.mrb[0].mxu0
      %867 = vmatprep.mubr.f32.mxu0 0.0
      %868 = vmatmul.mubr.f32.gmra.mrb[0].mxu0 %v776
      %v869 = vpop.f32.mrb[0].mxu0
      %v870 = vadd.f32 %v758, %v869
      %v871 = vpop.f32.mrb[0].mxu0
      %872 = vdwg.mxu0
      %vm873 = vcmask 130048
      %874 = vst.msk [vmem:[%s309] sm:$0xff] %vm873, %v845
      %875 = vst.msk [vmem:[%s309 + $0x8] sm:$0xff] %vm873, %v850
      %876 = vst.msk [vmem:[%s309 + $0x10] sm:$0xff] %vm873, %v855
      %877 = vst.msk [vmem:[%s309 + $0x18] sm:$0xff] %vm873, %v860
      %878 = vst.msk [vmem:[%s309 + $0x20] sm:$0xff] %vm873, %v865
      %879 = vst.msk [vmem:[%s309 + $0x28] sm:$0xff] %vm873, %v870
      %p880 = scmp.lt.s32.totalorder %s22, 1
      %s881 = scalar_select %p880, %s22, 1
      %p882 = scmp.lt.s32.totalorder %s23, 0
      %s883 = scalar_select %p882, %s23, 0
      %s884 = smul.addr %s881, 6
      %s885 = sadd.s32 %s883, %s884
      %s886 = smul.addr %s885, 8
      %s887 = scalar_lea.vmem %s7, %s886
      // Predicated region
      $region49: #{tpu_custom_call.1} parent=47 // pred_check
        %p888 = pneg %p204
      $region50: #{tpu_custom_call.1} parent=47 // pred_check_branch
        %890 = sbr.rel (%p888) target = $region52
      $region51: #{tpu_custom_call.1} parent=47 // pred_region
        _
      $region52: #{tpu_custom_call.1} parent=47 // pred_fallthru
        _
    $region48: #{tpu_custom_call.1} parent=5 // pred_fallthru
      _
    %p891 = scmp.le.s32.totalorder 2, %s13
    // Predicated region
    $region53: #{tpu_custom_call.1} parent=5 // pred_check
      %p892 = pneg %p891
    $region54: #{tpu_custom_call.1} parent=5 // pred_check_branch
      %894 = sbr.rel (%p892) target = $region56
    $region55: #{tpu_custom_call.1} parent=5 // pred_region
      %s895 = ssub.s32 %s13, 2
      // Predicated region
      $region57: #{tpu_custom_call.1} parent=55 // pred_check
        %p896 = pneg %p210
      $region58: #{tpu_custom_call.1} parent=55 // pred_check_branch
        %898 = sbr.rel (%p896) target = $region60
      $region59: #{tpu_custom_call.1} parent=55 // pred_region
        %p899 = scmp.lt.s32.totalorder %s24, 1
        %s900 = scalar_select %p899, %s24, 1
        %p901 = scmp.lt.s32.totalorder %s25, 0
        %s902 = scalar_select %p901, %s25, 0
        %s903 = smul.addr %s900, 6
        %s904 = sadd.s32 %s902, %s903
        %s905 = smul.addr %s904, 8
        %s906 = scalar_lea.vmem %s7, %s905
      $region60: #{tpu_custom_call.1} parent=55 // pred_fallthru
        _
    $region56: #{tpu_custom_call.1} parent=5 // pred_fallthru
      _
  $region6: #{tpu_custom_call.1} parent=0 // loop_footer
    %s17 = sadd.s32 1, %s13
  $region7: #{tpu_custom_call.1} parent=0 // loop_footer_branch
    %12 = sbr.rel target = $region3
  $region8: #{tpu_custom_call.1} parent=0 // loop_exit
    _

</llo_original>
